<compile_context>
chip_gen: v6e
topology: v6e:2x2x1
jax: 0.10.0
libtpu: 0.0.40
codegen_flags: <defaults>
</compile_context>

<pallas_src>
import functools

import jax
import jax.numpy as jnp
from jax.experimental import pallas as pl
from jax.experimental.pallas import tpu as pltpu

LN_EPS = 1e-5  # nn.LayerNorm default


def _round_up(v, m):
    return ((v + m - 1) // m) * m


@functools.lru_cache(maxsize=None)
def _vmem_cap_bytes():
    # Trace-time hardware query only; fallback is the smallest per-core VMEM (v7x = 64 MiB).
    try:
        return int(pltpu.get_tpu_info().vmem_capacity_bytes)
    except Exception:
        return 64 << 20


def _mlp_kernel(num_layers, x_ref, *refs):
    """Fused forward on one batch tile.

    refs = [w_0, b_0, ..., w_{L-1}, b_{L-1}, w_out, b_out, o_ref]
    Weights are bf16, pre-transposed to (in, out); biases are f32 (1, out).
    No feature padding anywhere, so LayerNorm statistics are plain row reductions.
    """
    o_ref = refs[-1]
    p = refs[:-1]

    x = x_ref[...]  # (tile_b, feat) f32

    # --- LayerNorm (elementwise_affine=False) ---
    # Padded (all-zero) batch rows give mean=0, var=0 -> rsqrt(eps) * 0 = 0: finite and the
    # rows are sliced off in the wrapper, so this is safe (do NOT "fix" with extra masking).
    mean = jnp.mean(x, axis=-1, keepdims=True)
    centered = x - mean
    var = jnp.mean(centered * centered, axis=-1, keepdims=True)
    h = centered * jax.lax.rsqrt(var + LN_EPS)

    # --- Hidden layers: Linear + ReLU (bf16 MXU operands, f32 accumulate) ---
    for li in range(num_layers):
        w = p[2 * li][...]
        b = p[2 * li + 1][...]
        h = jnp.dot(h.astype(jnp.bfloat16), w, preferred_element_type=jnp.float32) + b
        h = jnp.maximum(h, 0.0)

    # --- Output layer: Linear (no activation) ---
    w_out = p[2 * num_layers][...]
    b_out = p[2 * num_layers + 1][...]
    y = jnp.dot(h.astype(jnp.bfloat16), w_out, preferred_element_type=jnp.float32) + b_out

    o_ref[...] = y.astype(o_ref.dtype)


def prepare_params(params):
    """One-time parameter preprocessing (hoisted out of the forward).

    PyTorch Linear weights are (out, in); transpose to (in, out) and cast to bf16 for the MXU.
    Biases stay f32 as (1, out) rows. Returns a flat tuple usable as a jit pytree argument.
    """
    flat = []
    for (w, b) in params["hidden"]:
        flat.append(jnp.asarray(w, jnp.float32).T.astype(jnp.bfloat16))
        flat.append(jnp.asarray(b, jnp.float32).reshape(1, -1))
    w, b = params["out"]
    flat.append(jnp.asarray(w, jnp.float32).T.astype(jnp.bfloat16))
    flat.append(jnp.asarray(b, jnp.float32).reshape(1, -1))
    return tuple(flat)


@functools.partial(jax.jit, static_argnames=("tile_b",))
def simple_mlp_forward(x, flat, *, tile_b=1024):
    """x: (B, input_size) float32. flat: tuple from prepare_params()."""
    x = jnp.asarray(x, jnp.float32)
    B, feat = x.shape
    num_layers = len(flat) // 2 - 1
    out_dim = flat[-1].shape[-1]

    # --- batch tiling: big tiles (pipeline amortization), >=2 steps when the batch is large
    # (v7x megacore), minimal row padding. ---
    tb_max = max(8, min(int(tile_b), 2048))
    B8 = _round_up(B, 8)
    if B8 <= tb_max:
        n_steps = 1
        tb = B8
    else:
        n_steps = -(-B8 // tb_max)                  # cdiv
        tb = _round_up(-(-B8 // n_steps), 8)        # balance the steps, keep multiple of 8
    B_pad = tb * n_steps

    xp = x if B_pad == B else jnp.zeros((B_pad, feat), jnp.float32).at[:B].set(x)

    # --- VMEM budget: double-buffered x/out tiles + params (2x) + live intermediates + headroom,
    # capped at ~80% of this generation's physical per-core VMEM. ---
    param_bytes = sum(int(a.size) * a.dtype.itemsize for a in flat)
    max_width = max([feat, out_dim] + [a.shape[-1] for a in flat])
    io_bytes = 2 * tb * feat * 4 + 2 * tb * out_dim * 4
    interm_bytes = 4 * tb * max_width * 4
    need = 2 * param_bytes + io_bytes + interm_bytes + (4 << 20)
    vmem_limit = max(16 << 20, min(int(need), int(_vmem_cap_bytes() * 0.8)))

    x_spec = pl.BlockSpec((tb, feat), lambda i: (i, 0))          # full-width last dim: legal, no pad
    p_specs = [pl.BlockSpec(a.shape, lambda i: (0, 0)) for a in flat]
    out_spec = pl.BlockSpec((tb, out_dim), lambda i: (i, 0))     # real output width, no 128-pad

    yp = pl.pallas_call(
        functools.partial(_mlp_kernel, num_layers),
        out_shape=jax.ShapeDtypeStruct((B_pad, out_dim), jnp.float32),
        grid_spec=pltpu.PrefetchScalarGridSpec(
            num_scalar_prefetch=0,
            grid=(n_steps,),
            in_specs=[x_spec] + p_specs,
            out_specs=out_spec,
        ),
        compiler_params=pltpu.CompilerParams(
            dimension_semantics=("parallel",),
            vmem_limit_bytes=int(vmem_limit),
        ),
    )(xp, *flat)

    return yp if B_pad == B else yp[:B]


def init_params(key, input_size, hidden_size, num_layers, output_size):
    """Deterministic init mimicking nn.Linear (uniform(-1/sqrt(fan_in), 1/sqrt(fan_in)))."""
    params = {"hidden": [], "out": None}
    in_dim = input_size
    for _ in range(num_layers):
        key, kw, kb = jax.random.split(key, 3)
        bound = 1.0 / float(jnp.sqrt(in_dim))
        w = jax.random.uniform(kw, (hidden_size, in_dim), jnp.float32, -bound, bound)
        b = jax.random.uniform(kb, (hidden_size,), jnp.float32, -bound, bound)
        params["hidden"].append((w, b))
        in_dim = hidden_size
    key, kw, kb = jax.random.split(key, 3)
    bound = 1.0 / float(jnp.sqrt(in_dim))
    w = jax.random.uniform(kw, (output_size, in_dim), jnp.float32, -bound, bound)
    b = jax.random.uniform(kb, (output_size,), jnp.float32, -bound, bound)
    params["out"] = (w, b)
    return params


def reference_forward_bf16(x, params):
    """Pure-JAX reference matching the kernel's numerics (f32 LN, bf16 matmul operands)."""
    x = jnp.asarray(x, jnp.float32)
    mean = jnp.mean(x, axis=-1, keepdims=True)
    var = jnp.mean((x - mean) ** 2, axis=-1, keepdims=True)
    h = (x - mean) * jax.lax.rsqrt(var + LN_EPS)
    for (w, b) in params["hidden"]:
        w_bf = jnp.asarray(w, jnp.float32).astype(jnp.bfloat16)
        h = jnp.dot(h.astype(jnp.bfloat16), w_bf.T, preferred_element_type=jnp.float32) + b
        h = jnp.maximum(h, 0.0)
    w, b = params["out"]
    w_bf = jnp.asarray(w, jnp.float32).astype(jnp.bfloat16)
    return jnp.dot(h.astype(jnp.bfloat16), w_bf.T, preferred_element_type=jnp.float32) + b


def reference_forward_f32(x, params):
    """Full-precision (f32) reference of the original module semantics (loose-tolerance check)."""
    x = jnp.asarray(x, jnp.float32)
    mean = jnp.mean(x, axis=-1, keepdims=True)
    var = jnp.mean((x - mean) ** 2, axis=-1, keepdims=True)
    h = (x - mean) * jax.lax.rsqrt(var + LN_EPS)
    for (w, b) in params["hidden"]:
        h = jnp.maximum(jnp.dot(h, jnp.asarray(w, jnp.float32).T) + b, 0.0)
    w, b = params["out"]
    return jnp.dot(h, jnp.asarray(w, jnp.float32).T) + b


if __name__ == "__main__":
    input_size = 32
    hidden_size = 32
    num_layers = 2
    output_size = 8

    key = jax.random.PRNGKey(0)
    key, kx = jax.random.split(key)
    params = init_params(key, input_size, hidden_size, num_layers, output_size)
    flat = prepare_params(params)  # one-time parameter preprocessing (outside the jitted forward)

    # Small demo batch: single grid step, no batch padding.
    x_small = jax.random.normal(kx, (8, input_size), jnp.float32)
    out = jax.block_until_ready(simple_mlp_forward(x_small, flat))
    assert out.shape == (8, output_size)
    assert jnp.allclose(out, reference_forward_bf16(x_small, params), atol=2e-3, rtol=2e-3), \
        "mismatch vs bf16-matched reference (small batch)"
    assert jnp.allclose(out, reference_forward_f32(x_small, params), atol=1e-1, rtol=1e-1), \
        "mismatch vs f32 reference beyond bf16 quantization noise (small batch)"

    # Larger, non-multiple batch: exercises the multi-step pipelined grid (3 x 688-row tiles)
    # and the zero-padded-row path.
    key, kx2 = jax.random.split(key)
    x_big = jax.random.normal(kx2, (2052, input_size), jnp.float32)
    out_big = jax.block_until_ready(simple_mlp_forward(x_big, flat))
    assert out_big.shape == (2052, output_size)
    assert jnp.all(jnp.isfinite(out_big))
    assert jnp.allclose(out_big, reference_forward_bf16(x_big, params), atol=2e-3, rtol=2e-3), \
        "mismatch vs bf16-matched reference (big batch)"
    assert jnp.allclose(out_big, reference_forward_f32(x_big, params), atol=1e-1, rtol=1e-1), \
        "mismatch vs f32 reference beyond bf16 quantization noise (big batch)"

    print("KERNEL_OK")
</pallas_src>

<mosaic_0001>
module attributes {stable_mosaic.version = 11 : i64} {
  func.func @_mlp_kernel(%arg0: i32, %arg1: memref<8x32xf32, #tpu.memory_space<vmem>>, %arg2: memref<32x32xbf16, #tpu.memory_space<vmem>>, %arg3: memref<1x32xf32, #tpu.memory_space<vmem>>, %arg4: memref<32x32xbf16, #tpu.memory_space<vmem>>, %arg5: memref<1x32xf32, #tpu.memory_space<vmem>>, %arg6: memref<32x8xbf16, #tpu.memory_space<vmem>>, %arg7: memref<1x8xf32, #tpu.memory_space<vmem>>, %arg8: memref<8x8xf32, #tpu.memory_space<vmem>>) attributes {dimension_semantics = [#tpu.dimension_semantics<parallel>], iteration_bounds = array<i64: 1>, scalar_prefetch = 0 : i64, scratch_operands = 0 : i64, tpu.core_type = #tpu.core_type<tc>, window_params = [{transform_indices = @transform_0, window_bounds = array<i64: 8, 32>}, {pipeline_mode = #tpu.pipeline_mode<synchronous>, transform_indices = @transform_1, window_bounds = array<i64: 32, 32>}, {pipeline_mode = #tpu.pipeline_mode<synchronous>, transform_indices = @transform_2, window_bounds = array<i64: 1, 32>}, {pipeline_mode = #tpu.pipeline_mode<synchronous>, transform_indices = @transform_3, window_bounds = array<i64: 32, 32>}, {pipeline_mode = #tpu.pipeline_mode<synchronous>, transform_indices = @transform_4, window_bounds = array<i64: 1, 32>}, {pipeline_mode = #tpu.pipeline_mode<synchronous>, transform_indices = @transform_5, window_bounds = array<i64: 32, 8>}, {pipeline_mode = #tpu.pipeline_mode<synchronous>, transform_indices = @transform_6, window_bounds = array<i64: 1, 8>}, {transform_indices = @transform_7, window_bounds = array<i64: 8, 8>}]} {
    %c0 = arith.constant 0 : index
    %c0_0 = arith.constant 0 : index
    %0 = vector.load %arg1[%c0, %c0_0] : memref<8x32xf32, #tpu.memory_space<vmem>>, vector<8x32xf32>
    %cst = arith.constant dense<0.000000e+00> : vector<8xf32>
    %1 = vector.multi_reduction <add>, %0, %cst [1] : vector<8x32xf32> to vector<8xf32>
    %2 = vector.shape_cast %1 : vector<8xf32> to vector<8x1xf32>
    %cst_1 = arith.constant 3.200000e+01 : f32
    %3 = vector.broadcast %cst_1 : f32 to vector<8x1xf32>
    %4 = arith.divf %2, %3 : vector<8x1xf32>
    %5 = vector.broadcast %4 : vector<8x1xf32> to vector<8x32xf32>
    %6 = arith.subf %0, %5 : vector<8x32xf32>
    %7 = arith.mulf %6, %6 : vector<8x32xf32>
    %cst_2 = arith.constant dense<0.000000e+00> : vector<8xf32>
    %8 = vector.multi_reduction <add>, %7, %cst_2 [1] : vector<8x32xf32> to vector<8xf32>
    %9 = vector.shape_cast %8 : vector<8xf32> to vector<8x1xf32>
    %cst_3 = arith.constant 3.200000e+01 : f32
    %10 = vector.broadcast %cst_3 : f32 to vector<8x1xf32>
    %11 = arith.divf %9, %10 : vector<8x1xf32>
    %cst_4 = arith.constant 9.99999974E-6 : f32
    %12 = vector.broadcast %cst_4 : f32 to vector<8x1xf32>
    %13 = arith.addf %11, %12 : vector<8x1xf32>
    %14 = math.rsqrt %13 : vector<8x1xf32>
    %15 = vector.broadcast %14 : vector<8x1xf32> to vector<8x32xf32>
    %16 = arith.mulf %6, %15 : vector<8x32xf32>
    %c0_5 = arith.constant 0 : index
    %c0_6 = arith.constant 0 : index
    %17 = vector.load %arg2[%c0_5, %c0_6] : memref<32x32xbf16, #tpu.memory_space<vmem>>, vector<32x32xbf16>
    %c0_7 = arith.constant 0 : index
    %c0_8 = arith.constant 0 : index
    %18 = vector.load %arg3[%c0_7, %c0_8] : memref<1x32xf32, #tpu.memory_space<vmem>>, vector<1x32xf32>
    %19 = arith.truncf %16 : vector<8x32xf32> to vector<8x32xbf16>
    %cst_9 = arith.constant dense<0.000000e+00> : vector<8x32xf32>
    %20 = tpu.matmul %19, %17, %cst_9 {dimension_numbers = #tpu.dot_dimension_numbers<[1], [0], [0], [1], [0, 0, 1, 1], [], []>} : vector<8x32xbf16>, vector<32x32xbf16>, vector<8x32xf32> -> vector<8x32xf32>
    %21 = vector.broadcast %18 : vector<1x32xf32> to vector<8x32xf32>
    %22 = arith.addf %20, %21 : vector<8x32xf32>
    %cst_10 = arith.constant 0.000000e+00 : f32
    %23 = vector.broadcast %cst_10 : f32 to vector<8x32xf32>
    %24 = arith.maximumf %22, %23 : vector<8x32xf32>
    %c0_11 = arith.constant 0 : index
    %c0_12 = arith.constant 0 : index
    %25 = vector.load %arg4[%c0_11, %c0_12] : memref<32x32xbf16, #tpu.memory_space<vmem>>, vector<32x32xbf16>
    %c0_13 = arith.constant 0 : index
    %c0_14 = arith.constant 0 : index
    %26 = vector.load %arg5[%c0_13, %c0_14] : memref<1x32xf32, #tpu.memory_space<vmem>>, vector<1x32xf32>
    %27 = arith.truncf %24 : vector<8x32xf32> to vector<8x32xbf16>
    %cst_15 = arith.constant dense<0.000000e+00> : vector<8x32xf32>
    %28 = tpu.matmul %27, %25, %cst_15 {dimension_numbers = #tpu.dot_dimension_numbers<[1], [0], [0], [1], [0, 0, 1, 1], [], []>} : vector<8x32xbf16>, vector<32x32xbf16>, vector<8x32xf32> -> vector<8x32xf32>
    %29 = vector.broadcast %26 : vector<1x32xf32> to vector<8x32xf32>
    %30 = arith.addf %28, %29 : vector<8x32xf32>
    %cst_16 = arith.constant 0.000000e+00 : f32
    %31 = vector.broadcast %cst_16 : f32 to vector<8x32xf32>
    %32 = arith.maximumf %30, %31 : vector<8x32xf32>
    %c0_17 = arith.constant 0 : index
    %c0_18 = arith.constant 0 : index
    %33 = vector.load %arg6[%c0_17, %c0_18] : memref<32x8xbf16, #tpu.memory_space<vmem>>, vector<32x8xbf16>
    %c0_19 = arith.constant 0 : index
    %c0_20 = arith.constant 0 : index
    %34 = vector.load %arg7[%c0_19, %c0_20] : memref<1x8xf32, #tpu.memory_space<vmem>>, vector<1x8xf32>
    %35 = arith.truncf %32 : vector<8x32xf32> to vector<8x32xbf16>
    %cst_21 = arith.constant dense<0.000000e+00> : vector<8x8xf32>
    %36 = tpu.matmul %35, %33, %cst_21 {dimension_numbers = #tpu.dot_dimension_numbers<[1], [0], [0], [1], [0, 0, 1, 1], [], []>} : vector<8x32xbf16>, vector<32x8xbf16>, vector<8x8xf32> -> vector<8x8xf32>
    %37 = vector.broadcast %34 : vector<1x8xf32> to vector<8x8xf32>
    %38 = arith.addf %36, %37 : vector<8x8xf32>
    %c0_22 = arith.constant 0 : index
    %c0_23 = arith.constant 0 : index
    %39 = vector.load %arg8[%c0_22, %c0_23] : memref<8x8xf32, #tpu.memory_space<vmem>>, vector<8x8xf32>
    tpu.vector_store %arg8[%c0_22, %c0_23], %38 {strides = array<i32>} : memref<8x8xf32, #tpu.memory_space<vmem>>, vector<8x8xf32>,
    return
  }
  func.func @transform_0(%arg0: i32) -> (i32, i32) {
    %c0_i32 = arith.constant 0 : i32
    %c0_i32_0 = arith.constant 0 : i32
    return %arg0, %c0_i32 : i32, i32
  }
  func.func @transform_1(%arg0: i32) -> (i32, i32) {
    %c0_i32 = arith.constant 0 : i32
    %c0_i32_0 = arith.constant 0 : i32
    %c0_i32_1 = arith.constant 0 : i32
    return %c0_i32, %c0_i32_0 : i32, i32
  }
  func.func @transform_2(%arg0: i32) -> (i32, i32) {
    %c0_i32 = arith.constant 0 : i32
    %c0_i32_0 = arith.constant 0 : i32
    %c0_i32_1 = arith.constant 0 : i32
    return %c0_i32, %c0_i32_0 : i32, i32
  }
  func.func @transform_3(%arg0: i32) -> (i32, i32) {
    %c0_i32 = arith.constant 0 : i32
    %c0_i32_0 = arith.constant 0 : i32
    %c0_i32_1 = arith.constant 0 : i32
    return %c0_i32, %c0_i32_0 : i32, i32
  }
  func.func @transform_4(%arg0: i32) -> (i32, i32) {
    %c0_i32 = arith.constant 0 : i32
    %c0_i32_0 = arith.constant 0 : i32
    %c0_i32_1 = arith.constant 0 : i32
    return %c0_i32, %c0_i32_0 : i32, i32
  }
  func.func @transform_5(%arg0: i32) -> (i32, i32) {
    %c0_i32 = arith.constant 0 : i32
    %c0_i32_0 = arith.constant 0 : i32
    %c0_i32_1 = arith.constant 0 : i32
    return %c0_i32, %c0_i32_0 : i32, i32
  }
  func.func @transform_6(%arg0: i32) -> (i32, i32) {
    %c0_i32 = arith.constant 0 : i32
    %c0_i32_0 = arith.constant 0 : i32
    %c0_i32_1 = arith.constant 0 : i32
    return %c0_i32, %c0_i32_0 : i32, i32
  }
  func.func @transform_7(%arg0: i32) -> (i32, i32) {
    %c0_i32 = arith.constant 0 : i32
    %c0_i32_0 = arith.constant 0 : i32
    return %arg0, %c0_i32 : i32, i32
  }
}

</mosaic_0001>

<llo_original>
// kernel: simple_mlp_forward.1
$region0: #{simple_mlp_forward.1}
  #allocation0 [shape = 'u32[]', space=smem, size = 0x4, offset = 0x4, fixed_abs, tag = 'smem constant byte address 0x4 - core index']
  #allocation1 [shape = 'u32[144,128]{1,0:T(1,128)}', space=vmem, size = 0x12000, scoped, tag = 'internal scratch']
  %s0 = inlined_call_operand.hbm [shape: f32[8,32], index: 0, kind: input, shape index: {}]
  %s1 = inlined_call_operand.vmem [shape: bf16[32,32], index: 1, kind: input, shape index: {}]
  %s2 = inlined_call_operand.vmem [shape: f32[1,32], index: 2, kind: input, shape index: {}]
  %s3 = inlined_call_operand.hbm [shape: bf16[32,32], index: 3, kind: input, shape index: {}]
  %s4 = inlined_call_operand.vmem [shape: f32[1,32], index: 4, kind: input, shape index: {}]
  %s5 = inlined_call_operand.vmem [shape: bf16[32,8], index: 5, kind: input, shape index: {}]
  %s6 = inlined_call_operand.vmem [shape: f32[1,8], index: 6, kind: input, shape index: {}]
  %s7 = inlined_call_operand.hbm [shape: f32[8,8], index: 7, kind: output, shape index: {}]
  %s8 = sld [smem:[#allocation0]]
  $region46: #{simple_mlp_forward.1} parent=0
    _
  %s10 = ssub.s32 1, %s8
  %s11 = scalar_select 0, %s10, %s8
  $region1: #{simple_mlp_forward.1} parent=0
    #allocation2 [shape = 'u8[4096]{0}', space=vmem, size = 0x1000, scoped, tag = 'input window, operand 0, single buffered']
    #allocation3 [shape = 's32[1]{0}', space=sflag, size = 0x4, scoped, tag = 'scoped memory for simple_mlp_forward.1']
    #allocation4 [shape = 's32[1]{0}', space=sflag, size = 0x4, scoped, tag = 'scoped memory for simple_mlp_forward.1']
    #allocation5 [shape = 'u8[8192]{0}', space=vmem, size = 0x2000, scoped, tag = 'input window, operand 3, single buffered']
    #allocation6 [shape = 's32[1]{0}', space=sflag, size = 0x4, scoped, tag = 'scoped memory for simple_mlp_forward.1']
    #allocation7 [shape = 'u8[4096]{0}', space=vmem, size = 0x1000, scoped, tag = 'output window, operand 0, single buffered']
    %12 = vsyncpa [#allocation3], 0
    %13 = vsyncpa [#allocation6], 0
    %14 = vsyncpa [#allocation4], 0
    // Predicated region
    $region2: #{simple_mlp_forward.1} parent=1 // pred_check
      _
    $region3: #{simple_mlp_forward.1} parent=1 // pred_check_branch
      %16 = sbr.rel (0) target = $region5
    $region4: #{simple_mlp_forward.1} parent=1 // pred_region
      %s18 = ssub.s32 128, 128
      %19 = vsyncadd [#allocation3], %s18
      %s21 = sshll.u32 [#allocation2], 4
      %s22 = int_to_ptr.vmem [resolvable:$true] %s21
      %24 = dma.hbm_to_vmem [thread:$0]  %s0, 128, %s22, [#allocation3]
    $region5: #{simple_mlp_forward.1} parent=1 // pred_fallthru
      _
    // Predicated region
    $region6: #{simple_mlp_forward.1} parent=1 // pred_check
      _
    $region7: #{simple_mlp_forward.1} parent=1 // pred_check_branch
      %26 = sbr.rel (0) target = $region9
    $region8: #{simple_mlp_forward.1} parent=1 // pred_region
      _
    $region9: #{simple_mlp_forward.1} parent=1 // pred_fallthru
      _
    // Predicated region
    $region10: #{simple_mlp_forward.1} parent=1 // pred_check
      _
    $region11: #{simple_mlp_forward.1} parent=1 // pred_check_branch
      %28 = sbr.rel (0) target = $region13
    $region12: #{simple_mlp_forward.1} parent=1 // pred_region
      _
    $region13: #{simple_mlp_forward.1} parent=1 // pred_fallthru
      _
    // Predicated region
    $region14: #{simple_mlp_forward.1} parent=1 // pred_check
      _
    $region15: #{simple_mlp_forward.1} parent=1 // pred_check_branch
      %30 = sbr.rel (0) target = $region17
    $region16: #{simple_mlp_forward.1} parent=1 // pred_region
      %s32 = ssub.s32 256, 256
      %33 = vsyncadd [#allocation6], %s32
      %s34 = sshll.u32 [#allocation5], 4
      %s35 = int_to_ptr.vmem [resolvable:$true] %s34
      %40 = dma.hbm_to_vmem [thread:$0]  %s3, 256, %s35, [#allocation6], 64, 64, 4
    $region17: #{simple_mlp_forward.1} parent=1 // pred_fallthru
      _
    // Predicated region
    $region18: #{simple_mlp_forward.1} parent=1 // pred_check
      _
    $region19: #{simple_mlp_forward.1} parent=1 // pred_check_branch
      %42 = sbr.rel (0) target = $region21
    $region20: #{simple_mlp_forward.1} parent=1 // pred_region
      _
    $region21: #{simple_mlp_forward.1} parent=1 // pred_fallthru
      _
    // Predicated region
    $region22: #{simple_mlp_forward.1} parent=1 // pred_check
      _
    $region23: #{simple_mlp_forward.1} parent=1 // pred_check_branch
      %44 = sbr.rel (0) target = $region25
    $region24: #{simple_mlp_forward.1} parent=1 // pred_region
      _
    $region25: #{simple_mlp_forward.1} parent=1 // pred_fallthru
      _
    // Predicated region
    $region26: #{simple_mlp_forward.1} parent=1 // pred_check
      _
    $region27: #{simple_mlp_forward.1} parent=1 // pred_check_branch
      %46 = sbr.rel (0) target = $region29
    $region28: #{simple_mlp_forward.1} parent=1 // pred_region
      _
    $region29: #{simple_mlp_forward.1} parent=1 // pred_fallthru
      _
    // Predicated region
    $region30: #{simple_mlp_forward.1} parent=1 // pred_check
      _
    $region31: #{simple_mlp_forward.1} parent=1 // pred_check_branch
      %48 = sbr.rel (0) target = $region33
    $region32: #{simple_mlp_forward.1} parent=1 // pred_region
      %49 = dma.done [#allocation3], 128
    $region33: #{simple_mlp_forward.1} parent=1 // pred_fallthru
      _
    // Predicated region
    $region34: #{simple_mlp_forward.1} parent=1 // pred_check
      _
    $region35: #{simple_mlp_forward.1} parent=1 // pred_check_branch
      %51 = sbr.rel (0) target = $region37
    $region36: #{simple_mlp_forward.1} parent=1 // pred_region
      %52 = dma.done [#allocation6], 256
    $region37: #{simple_mlp_forward.1} parent=1 // pred_fallthru
      _
    %v54 = vld [vmem:[#allocation2] sm:$0xff]
    %vm55 = vcmask 261120
    %v56 = vsel %vm55, %v54, 0.0
    %57 = vadd.xlane.f32.xlu0 %v56
    %v58 = vpop.xlane.xlu0 %57
    %v59 = vrcp.pop 32.0
    %v60 = vmul.f32 %v58, %v59
    %v61 = vsub.f32 %v54, %v60
    %v62 = vmul.f32 %v61, %v61
    %v63 = vsel %vm55, %v62, 0.0
    %64 = vadd.xlane.f32.xlu0 %v63
    %v65 = vpop.xlane.xlu0 %64
    %v66 = vmul.f32 %v65, %v59
    %v67 = vadd.f32 %v66, 1e-05
    %v68 = vrsqrt.pop %v67
    %v69 = vmul.f32 %v61, %v68
    %v70 = vld [vmem:[%s1] sm:$0xf]
    %v71 = vld [vmem:[%s1 + $0x4] sm:$0xf]
    %v72 = vld [vmem:[%s1 + $0x8] sm:$0xf]
    %v73 = vld [vmem:[%s1 + $0xc] sm:$0xf]
    %v74 = vld [vmem:[%s2] sm:$0x1]
    %v75 = vpack.c.bf16 %v69, %v69
    %v77 = vlaneseq
    %v78 = vshrl.u32 %v77, 7
    %v79 = vsub.s32 0, %v78
    %v80 = vrot.slane %v74, %v79
    %v86 = vunpack.c.l.b16 %v70
    %v87 = vunpack.c.l.b16 %v71
    %v88 = vunpack.c.l.b16 %v72
    %v89 = vunpack.c.l.b16 %v73
    %v90 = vpack.c.b16 %v87, %v86
    %v91 = vpack.c.b16 %v89, %v88
    %v95 = vsel %vm55, %v75, 0
    %97 = vmatprep.subr.bf16.mxu0 0
    %98 = vmatpush1.bf16.msra.mxu0 0
    %99 = vmatprep.subr.bf16.mxu0 0
    %100 = vmatpush1.bf16.msra.mxu0 0
    %101 = vmatprep.subr.bf16.mxu0 0
    %102 = vmatpush1.bf16.msra.mxu0 0
    %103 = vmatprep.subr.bf16.mxu0 0
    %104 = vmatpush1.bf16.msra.mxu0 0
    %105 = vmatprep.subr.bf16.mxu0 0
    %106 = vmatpush1.bf16.msra.mxu0 0
    %107 = vmatprep.subr.bf16.mxu0 0
    %108 = vmatpush1.bf16.msra.mxu0 0
    %109 = vmatprep.subr.bf16.mxu0 0
    %110 = vmatpush1.bf16.msra.mxu0 %v91
    %111 = vmatprep.subr.bf16.mxu0 0
    %112 = vmatpush1.bf16.msra.mxu0 %v90
    %113 = vmatprep.subr.bf16.mxu0 0
    %114 = vmatpush2.bf16.msra.mxu0 0
    %115 = vmatprep.subr.bf16.mxu0 0
    %116 = vmatpush2.bf16.msra.mxu0 0
    %117 = vmatprep.subr.bf16.mxu0 0
    %118 = vmatpush2.bf16.msra.mxu0 0
    %119 = vmatprep.subr.bf16.mxu0 0
    %120 = vmatpush2.bf16.msra.mxu0 0
    %121 = vmatprep.subr.bf16.mxu0 0
    %122 = vmatpush2.bf16.msra.mxu0 0
    %123 = vmatprep.subr.bf16.mxu0 0
    %124 = vmatpush2.bf16.msra.mxu0 0
    %125 = vmatprep.subr.bf16.mxu0 0
    %126 = vmatpush2.bf16.msra.mxu0 0
    %127 = vmatprep.subr.bf16.mxu0 0
    %128 = vmatpush2.bf16.msra.mxu0 0
    %129 = vmatprep.mubr.bf16.mxu0 0
    %130 = vmatmul.mubr.bf16.gmra.mxu0 %v95
    %v131 = vpop.f32.mrf.mxu0
    %v132 = vadd.f32 %v80, %v131
    %v133 = vpop.f32.mrf.mxu0
    %v134 = vpop.f32.mrf.mxu0
    %v135 = vpop.f32.mrf.mxu0
    %136 = vdwg.mxu0
    %v137 = vmax.f32 %v132, 0.0
    %v138 = vld [vmem:[#allocation5] sm:$0xf]
    %v139 = vld [vmem:[#allocation5 + $0x4] sm:$0xf]
    %v140 = vld [vmem:[#allocation5 + $0x8] sm:$0xf]
    %v141 = vld [vmem:[#allocation5 + $0xc] sm:$0xf]
    %v142 = vld [vmem:[%s4] sm:$0x1]
    %v143 = vpack.c.bf16 %v137, %v137
    %v145 = vlaneseq
    %v146 = vshrl.u32 %v145, 7
    %v147 = vsub.s32 0, %v146
    %v148 = vrot.slane %v142, %v147
    %v154 = vunpack.c.l.b16 %v138
    %v155 = vunpack.c.l.b16 %v139
    %v156 = vunpack.c.l.b16 %v140
    %v157 = vunpack.c.l.b16 %v141
    %v158 = vpack.c.b16 %v155, %v154
    %v159 = vpack.c.b16 %v157, %v156
    %v163 = vsel %vm55, %v143, 0
    %165 = vmatprep.subr.bf16.mxu0 0
    %166 = vmatpush1.bf16.msra.mxu0 0
    %167 = vmatprep.subr.bf16.mxu0 0
    %168 = vmatpush1.bf16.msra.mxu0 0
    %169 = vmatprep.subr.bf16.mxu0 0
    %170 = vmatpush1.bf16.msra.mxu0 0
    %171 = vmatprep.subr.bf16.mxu0 0
    %172 = vmatpush1.bf16.msra.mxu0 0
    %173 = vmatprep.subr.bf16.mxu0 0
    %174 = vmatpush1.bf16.msra.mxu0 0
    %175 = vmatprep.subr.bf16.mxu0 0
    %176 = vmatpush1.bf16.msra.mxu0 0
    %177 = vmatprep.subr.bf16.mxu0 0
    %178 = vmatpush1.bf16.msra.mxu0 %v159
    %179 = vmatprep.subr.bf16.mxu0 0
    %180 = vmatpush1.bf16.msra.mxu0 %v158
    %181 = vmatprep.subr.bf16.mxu0 0
    %182 = vmatpush2.bf16.msra.mxu0 0
    %183 = vmatprep.subr.bf16.mxu0 0
    %184 = vmatpush2.bf16.msra.mxu0 0
    %185 = vmatprep.subr.bf16.mxu0 0
    %186 = vmatpush2.bf16.msra.mxu0 0
    %187 = vmatprep.subr.bf16.mxu0 0
    %188 = vmatpush2.bf16.msra.mxu0 0
    %189 = vmatprep.subr.bf16.mxu0 0
    %190 = vmatpush2.bf16.msra.mxu0 0
    %191 = vmatprep.subr.bf16.mxu0 0
    %192 = vmatpush2.bf16.msra.mxu0 0
    %193 = vmatprep.subr.bf16.mxu0 0
    %194 = vmatpush2.bf16.msra.mxu0 0
    %195 = vmatprep.subr.bf16.mxu0 0
    %196 = vmatpush2.bf16.msra.mxu0 0
    %197 = vmatprep.mubr.bf16.mxu0 0
    %198 = vmatmul.mubr.bf16.gmra.mxu0 %v163
    %v199 = vpop.f32.mrf.mxu0
    %v200 = vadd.f32 %v148, %v199
    %v201 = vpop.f32.mrf.mxu0
    %v202 = vpop.f32.mrf.mxu0
    %v203 = vpop.f32.mrf.mxu0
    %204 = vdwg.mxu0
    %v205 = vmax.f32 %v200, 0.0
    %v206 = vld [vmem:[%s5] sm:$0xf]
    %v207 = vld [vmem:[%s5 + $0x4] sm:$0xf]
    %v208 = vld [vmem:[%s5 + $0x8] sm:$0xf]
    %v209 = vld [vmem:[%s5 + $0xc] sm:$0xf]
    %v210 = vld [vmem:[%s6] sm:$0x1]
    %v211 = vpack.c.bf16 %v205, %v205
    %v213 = vlaneseq
    %v214 = vshrl.u32 %v213, 7
    %v215 = vsub.s32 0, %v214
    %v216 = vrot.slane %v210, %v215
    %v222 = vunpack.c.l.b16 %v206
    %v223 = vunpack.c.l.b16 %v207
    %v224 = vunpack.c.l.b16 %v208
    %v225 = vunpack.c.l.b16 %v209
    %v226 = vpack.c.b16 %v223, %v222
    %v227 = vpack.c.b16 %v225, %v224
    %v231 = vsel %vm55, %v211, 0
    %233 = vmatprep.subr.bf16.mxu0 0
    %234 = vmatpush1.bf16.msra.mxu0 0
    %235 = vmatprep.subr.bf16.mxu0 0
    %236 = vmatpush1.bf16.msra.mxu0 0
    %237 = vmatprep.subr.bf16.mxu0 0
    %238 = vmatpush1.bf16.msra.mxu0 0
    %239 = vmatprep.subr.bf16.mxu0 0
    %240 = vmatpush1.bf16.msra.mxu0 0
    %241 = vmatprep.subr.bf16.mxu0 0
    %242 = vmatpush1.bf16.msra.mxu0 0
    %243 = vmatprep.subr.bf16.mxu0 0
    %244 = vmatpush1.bf16.msra.mxu0 0
    %245 = vmatprep.subr.bf16.mxu0 0
    %246 = vmatpush1.bf16.msra.mxu0 %v227
    %247 = vmatprep.subr.bf16.mxu0 0
    %248 = vmatpush1.bf16.msra.mxu0 %v226
    %249 = vmatprep.subr.bf16.mxu0 0
    %250 = vmatpush2.bf16.msra.mxu0 0
    %251 = vmatprep.subr.bf16.mxu0 0
    %252 = vmatpush2.bf16.msra.mxu0 0
    %253 = vmatprep.subr.bf16.mxu0 0
    %254 = vmatpush2.bf16.msra.mxu0 0
    %255 = vmatprep.subr.bf16.mxu0 0
    %256 = vmatpush2.bf16.msra.mxu0 0
    %257 = vmatprep.subr.bf16.mxu0 0
    %258 = vmatpush2.bf16.msra.mxu0 0
    %259 = vmatprep.subr.bf16.mxu0 0
    %260 = vmatpush2.bf16.msra.mxu0 0
    %261 = vmatprep.subr.bf16.mxu0 0
    %262 = vmatpush2.bf16.msra.mxu0 0
    %263 = vmatprep.subr.bf16.mxu0 0
    %264 = vmatpush2.bf16.msra.mxu0 0
    %265 = vmatprep.mubr.bf16.mxu0 0
    %266 = vmatmul.mubr.bf16.gmra.mxu0 %v231
    %v267 = vpop.f32.mrf.mxu0
    %v268 = vadd.f32 %v216, %v267
    %v269 = vpop.f32.mrf.mxu0
    %v270 = vpop.f32.mrf.mxu0
    %v271 = vpop.f32.mrf.mxu0
    %272 = vdwg.mxu0
    %vm273 = vcmask 64512
    %274 = vst.msk [vmem:[#allocation7] sm:$0xff] %vm273, %v268
    // Predicated region
    $region38: #{simple_mlp_forward.1} parent=1 // pred_check
      _
    $region39: #{simple_mlp_forward.1} parent=1 // pred_check_branch
      %276 = sbr.rel (0) target = $region41
    $region40: #{simple_mlp_forward.1} parent=1 // pred_region
      %s278 = ssub.s32 128, 128
      %279 = vsyncadd [#allocation4], %s278
      %s281 = sshll.u32 [#allocation7], 4
      %s282 = int_to_ptr.vmem [resolvable:$true] %s281
      %284 = dma.vmem_to_hbm [thread:$0]  %s282, 128, %s7, [#allocation4]
    $region41: #{simple_mlp_forward.1} parent=1 // pred_fallthru
      _
    // Predicated region
    $region42: #{simple_mlp_forward.1} parent=1 // pred_check
      _
    $region43: #{simple_mlp_forward.1} parent=1 // pred_check_branch
      %286 = sbr.rel (0) target = $region45
    $region44: #{simple_mlp_forward.1} parent=1 // pred_region
      %287 = dma.done [#allocation4], 128
    $region45: #{simple_mlp_forward.1} parent=1 // pred_fallthru
      _
    %288 = vsyncpa [#allocation3], 1
    %289 = vsyncpa [#allocation6], 1
    %290 = vsyncpa [#allocation4], 1

</llo_original>
